<compile_context>
chip_gen: v5e
topology: v5e:2x2
jax: 0.10.0
libtpu: 0.0.40
codegen_flags: <defaults>
</compile_context>

<pallas_src>
import functools

import jax
import jax.numpy as jnp
from jax.experimental import pallas as pl
from jax.experimental.pallas import tpu as pltpu


# --- tiling knobs ------------------------------------------------------------
# Per grid step the kernel moves ~(F + 2C) * 4 * tile_b bytes of HBM
# (F = C + H + E input rows, 2C output rows).  At tile_b = 16384 and F = 16
# that is ~2 MiB per step (>= ~80% of HBM roofline on all generations) while
# the double-buffered VMEM footprint (~4 MiB + temporaries) stays well inside
# v5e's 16 MiB scoped default (raised below) and v7x's 64 MiB physical VMEM.
_MAX_TILE_B = 16384
# Below this batch, splitting into more than one tile buys nothing.
_MIN_SPLIT_B = 512
# Below this batch, the fixed pallas_call launch + layout plumbing dominates;
# XLA fuses this tiny VPU-only op perfectly, so fall back to plain JAX.
_DEFAULT_MIN_PALLAS_BATCH = 2048
# Above v5e's 16 MiB scoped default, well under v7x's 64 MiB physical VMEM.
_VMEM_LIMIT_BYTES = 32 * 1024 * 1024


def _round_up(x, m):
    return -(-x // m) * m


def _choose_tile_b(B):
    """Pick (tile_b, b_pad): lane-dense tiles, >= 2 grid steps when worthwhile."""
    if B <= _MIN_SPLIT_B:
        return B, B                     # full-extent block; grid=(1,)
    # At least 2 grid steps so dimension_semantics=("parallel",) can shard the
    # batch across v7x's two TensorCores; as few (big) steps as possible
    # otherwise, keeping the lane dim a multiple of 128 and padding minimal.
    n_steps = max(2, pl.cdiv(B, _MAX_TILE_B))
    tile_b = min(_round_up(pl.cdiv(B, n_steps), 128), _MAX_TILE_B)
    return tile_b, _round_up(B, tile_b)


def _softplus(x):
    # Matches torch.nn.Softplus default (beta=1, threshold=20); the jnp.minimum
    # keeps the unselected exp branch finite (strict NaN-safety).
    return jnp.where(x > 20.0, x, jnp.log1p(jnp.exp(jnp.minimum(x, 20.0))))


def _conformity_kernel(params_ref, wcol_ref, x_ref, out_ref, *,
                       cand_num, his_size, emb_size, hyper_alpha):
    # Feature-major tile: feature on sublanes, batch on (lane-dense) lanes.
    #   x_ref:    [F, TB]  rows 0:C candidate_ctr, C:C+H history_ctr, C+H:F user_kl
    #   wcol_ref: [F, 1]   rows 0:C cand scalar, C:C+H W_h, C+H:F W_u
    #   params_ref (SMEM, f32[2]): [b_h, b_u]
    #   out_ref:  [2C, TB] rows 0:C conformity, C:2C candidate_conformity
    C, H, E = cand_num, his_size, emb_size

    b_h = params_ref[0]
    b_u = params_ref[1]

    x = x_ref[...]                                   # [F, TB]
    w = wcol_ref[...]                                # [F, 1] (lane broadcast)
    prod = w * x                                     # one full-vreg VPU multiply

    # candidate path: sigmoid(candidate_conformity_scalar * candidate_ctr)
    cand_conf = jax.nn.sigmoid(prod[0:C])            # [C, TB]

    # his_conformity = Softplus(Linear(H, 1)): multiply done above, sublane
    # (XLU) reduction here — full vregs, no MXU, no 1-of-8-sublane FMA loop.
    news_lin = jnp.sum(prod[C:C + H], axis=0, keepdims=True) + b_h
    news_side = _softplus(news_lin)                  # [1, TB]

    # users_conformity = Sigmoid(Linear(E, 1))
    u_lin = jnp.sum(prod[C + H:C + H + E], axis=0, keepdims=True) + b_u
    weight = jax.nn.sigmoid(u_lin)                   # [1, TB]

    # _fuse_func(news_side, user_side=user_kl, weight) with fuse='add':
    # weight is [B, 1] so mean(weight * user_kl) == weight * mean(user_kl).
    ukl_mean = jnp.sum(x[C + H:C + H + E], axis=0, keepdims=True) * (1.0 / E)
    user_conf = weight * ukl_mean + (1.0 - weight) * news_side    # [1, TB]

    out_ref[0:C, :] = cand_conf + hyper_alpha * user_conf   # conformity
    out_ref[C:, :] = cand_conf                               # candidate_conformity


def _forward_jax(candidate_ctr, history_ctr, user_kl,
                 w_h, b_h, w_u, b_u, cand_conf_scalar, hyper_alpha=1.0):
    # Pure-JAX path mirroring the PyTorch module (used as small-B fallback and
    # as the correctness reference).
    news_side = _softplus(history_ctr @ w_h + b_h)
    weight = jax.nn.sigmoid(user_kl @ w_u + b_u)
    w_users = jnp.mean(weight * user_kl, axis=-1, keepdims=True)
    w_news = (1.0 - weight) * news_side
    user_conformity = w_users + w_news
    cand_conf = jax.nn.sigmoid(jnp.reshape(cand_conf_scalar, ()) * candidate_ctr)
    conf = cand_conf + hyper_alpha * user_conformity
    return conf, cand_conf


def conformity_calv2(candidate_ctr, history_ctr, user_kl,
                     w_h, b_h, w_u, b_u, cand_conf_scalar,
                     hyper_alpha=1.0,
                     min_pallas_batch=_DEFAULT_MIN_PALLAS_BATCH,
                     feature_major_out=False):
    B, C = candidate_ctr.shape
    _, H = history_ctr.shape
    _, E = user_kl.shape
    F = C + H + E

    # Small-B fallback: kernel launch + layout plumbing dominates; let XLA fuse.
    if B < min_pallas_batch:
        conf, cand_conf = _forward_jax(candidate_ctr, history_ctr, user_kl,
                                       w_h, b_h, w_u, b_u, cand_conf_scalar,
                                       hyper_alpha)
        if feature_major_out:
            return conf.T, cand_conf.T
        return conf, cand_conf

    tile_b, b_pad = _choose_tile_b(B)

    # One fused concat + cast + pad + transpose -> a single [F, b_pad]
    # feature-major input stream (one input DMA per step instead of three; no
    # per-array sublane padding of the tiny H / E tiles).
    x = jnp.concatenate([candidate_ctr, history_ctr, user_kl],
                        axis=1).astype(jnp.float32)              # [B, F]
    if b_pad != B:
        x = jnp.pad(x, ((0, b_pad - B), (0, 0)))
    x_t = x.T                                                    # [F, b_pad]

    # Tiny per-feature-row weight column (VMEM, resident across the grid).
    w_col = jnp.concatenate([
        jnp.broadcast_to(jnp.reshape(cand_conf_scalar, (1, 1)), (C, 1)),
        jnp.reshape(w_h, (H, 1)),
        jnp.reshape(w_u, (E, 1)),
    ], axis=0).astype(jnp.float32)                               # [F, 1]

    # Biases as a 2-element SMEM array (one tiny transfer, no VMEM buffers).
    params = jnp.stack([jnp.reshape(b_h, ()),
                        jnp.reshape(b_u, ())]).astype(jnp.float32)   # f32[2]

    kernel = functools.partial(_conformity_kernel, cand_num=C, his_size=H,
                               emb_size=E, hyper_alpha=float(hyper_alpha))

    out_slab = pl.pallas_call(
        kernel,
        out_shape=jax.ShapeDtypeStruct((2 * C, b_pad), jnp.float32),
        grid_spec=pltpu.PrefetchScalarGridSpec(
            num_scalar_prefetch=0,
            grid=(b_pad // tile_b,),
            in_specs=[
                pl.BlockSpec(memory_space=pltpu.MemorySpace.SMEM),     # biases
                pl.BlockSpec((F, 1), lambda i: (0, 0)),                # weight column
                pl.BlockSpec((F, tile_b), lambda i: (0, i)),           # fused inputs
            ],
            out_specs=pl.BlockSpec((2 * C, tile_b), lambda i: (0, i)),  # fused outputs
        ),
        compiler_params=pltpu.CompilerParams(
            dimension_semantics=("parallel",),
            vmem_limit_bytes=_VMEM_LIMIT_BYTES),
    )(params, w_col, x_t)

    if feature_major_out:
        # Consumers that accept [C, B] outputs avoid the transpose entirely.
        return out_slab[:C, :B], out_slab[C:, :B]

    # Single transpose back to the module's [B, C] convention, then cheap slices.
    out_bt = out_slab.T[:B]                                      # [B, 2C]
    return out_bt[:, :C], out_bt[:, C:]


if __name__ == "__main__":
    # Module-consistent small shapes: candidate_num=8, his_size=6, emb_size=2.
    C, H, E = 8, 6, 2
    key = jax.random.PRNGKey(0)
    k1, k2, k3, k4, k5, k6, k7, k8 = jax.random.split(key, 8)

    # Deterministic parameter init (module __init__ shapes; synthetic weights).
    w_h = jax.random.normal(k4, (H, 1), jnp.float32) * 0.1   # his_conformity Linear weight
    b_h = jax.random.normal(k5, (1, 1), jnp.float32) * 0.1   # his_conformity Linear bias
    w_u = jax.random.normal(k6, (E, 1), jnp.float32) * 0.1   # users_conformity Linear weight
    b_u = jax.random.normal(k7, (1, 1), jnp.float32) * 0.1   # users_conformity Linear bias
    cand_scalar = jax.random.normal(k8, (1, 1), jnp.float32)  # nn.init.normal(Parameter(Tensor(1)))

    # B=4: single full-extent tile.  B=640: padded, 2-step "parallel" grid.
    for B in (4, 640):
        kk = jax.random.fold_in(k1, B)
        ka, kb, kc = jax.random.split(kk, 3)
        candidate_ctr = jax.random.uniform(ka, (B, C), jnp.float32)
        history_ctr = jax.random.uniform(kb, (B, H), jnp.float32)
        user_kl = jax.random.normal(kc, (B, E), jnp.float32)

        conf, cand_conf = conformity_calv2(
            candidate_ctr, history_ctr, user_kl,
            w_h, b_h, w_u, b_u, cand_scalar,
            hyper_alpha=1.0, min_pallas_batch=0)   # force the Pallas path
        jax.block_until_ready((conf, cand_conf))

        ref_conf, ref_cand_conf = _forward_jax(
            candidate_ctr, history_ctr, user_kl,
            w_h, b_h, w_u, b_u, cand_scalar, hyper_alpha=1.0)

        assert conf.shape == (B, C) and cand_conf.shape == (B, C)
        assert jnp.allclose(conf, ref_conf, atol=1e-5, rtol=1e-5)
        assert jnp.allclose(cand_conf, ref_cand_conf, atol=1e-5, rtol=1e-5)

    print("KERNEL_OK")
</pallas_src>

<mosaic_0001>
module attributes {stable_mosaic.version = 11 : i64} {
  func.func @_conformity_kernel(%arg0: i32, %arg1: memref<2xf32, #tpu.memory_space<smem>>, %arg2: memref<16x1xf32, #tpu.memory_space<vmem>>, %arg3: memref<16x4xf32, #tpu.memory_space<vmem>>, %arg4: memref<16x4xf32, #tpu.memory_space<vmem>>) attributes {dimension_semantics = [#tpu.dimension_semantics<parallel>], iteration_bounds = array<i64: 1>, scalar_prefetch = 0 : i64, scratch_operands = 0 : i64, tpu.core_type = #tpu.core_type<tc>, window_params = [{transform_indices = @transform_0, window_bounds = array<i64: 2>}, {pipeline_mode = #tpu.pipeline_mode<synchronous>, transform_indices = @transform_1, window_bounds = array<i64: 16, 1>}, {transform_indices = @transform_2, window_bounds = array<i64: 16, 4>}, {transform_indices = @transform_3, window_bounds = array<i64: 16, 4>}]} {
    %c0 = arith.constant 0 : index
    %0 = memref.load %arg1[%c0] : memref<2xf32, #tpu.memory_space<smem>>
    %c1 = arith.constant 1 : index
    %1 = memref.load %arg1[%c1] : memref<2xf32, #tpu.memory_space<smem>>
    %c0_0 = arith.constant 0 : index
    %c0_1 = arith.constant 0 : index
    %2 = vector.load %arg3[%c0_0, %c0_1] : memref<16x4xf32, #tpu.memory_space<vmem>>, vector<16x4xf32>
    %c0_2 = arith.constant 0 : index
    %c0_3 = arith.constant 0 : index
    %3 = vector.load %arg2[%c0_2, %c0_3] : memref<16x1xf32, #tpu.memory_space<vmem>>, vector<16x1xf32>
    %4 = vector.broadcast %3 : vector<16x1xf32> to vector<16x4xf32>
    %5 = arith.mulf %4, %2 : vector<16x4xf32>
    %6 = vector.extract_strided_slice %5 {offsets = [0, 0], sizes = [8, 4], strides = [1, 1]} : vector<16x4xf32> to vector<8x4xf32>
    %7 = arith.negf %6 : vector<8x4xf32>
    %8 = math.exp %7 : vector<8x4xf32>
    %cst = arith.constant 1.000000e+00 : f32
    %9 = vector.broadcast %cst : f32 to vector<8x4xf32>
    %10 = arith.addf %9, %8 : vector<8x4xf32>
    %11 = arith.divf %9, %10 : vector<8x4xf32>
    %12 = vector.extract_strided_slice %5 {offsets = [8, 0], sizes = [6, 4], strides = [1, 1]} : vector<16x4xf32> to vector<6x4xf32>
    %cst_4 = arith.constant dense<0.000000e+00> : vector<4xf32>
    %13 = vector.multi_reduction <add>, %12, %cst_4 [0] : vector<6x4xf32> to vector<4xf32>
    %14 = vector.shape_cast %13 : vector<4xf32> to vector<1x4xf32>
    %15 = vector.broadcast %0 : f32 to vector<1x4xf32>
    %16 = arith.addf %14, %15 : vector<1x4xf32>
    %cst_5 = arith.constant 2.000000e+01 : f32
    %17 = vector.broadcast %cst_5 : f32 to vector<1x4xf32>
    %18 = arith.cmpf ogt, %16, %17 : vector<1x4xf32>
    %cst_6 = arith.constant 2.000000e+01 : f32
    %19 = vector.broadcast %cst_6 : f32 to vector<1x4xf32>
    %20 = arith.minimumf %16, %19 : vector<1x4xf32>
    %21 = math.exp %20 : vector<1x4xf32>
    %22 = math.log1p %21 : vector<1x4xf32>
    %23 = arith.select %18, %16, %22 : vector<1x4xi1>, vector<1x4xf32>
    %24 = vector.extract_strided_slice %5 {offsets = [14, 0], sizes = [2, 4], strides = [1, 1]} : vector<16x4xf32> to vector<2x4xf32>
    %cst_7 = arith.constant dense<0.000000e+00> : vector<4xf32>
    %25 = vector.multi_reduction <add>, %24, %cst_7 [0] : vector<2x4xf32> to vector<4xf32>
    %26 = vector.shape_cast %25 : vector<4xf32> to vector<1x4xf32>
    %27 = vector.broadcast %1 : f32 to vector<1x4xf32>
    %28 = arith.addf %26, %27 : vector<1x4xf32>
    %29 = arith.negf %28 : vector<1x4xf32>
    %30 = math.exp %29 : vector<1x4xf32>
    %cst_8 = arith.constant 1.000000e+00 : f32
    %31 = vector.broadcast %cst_8 : f32 to vector<1x4xf32>
    %32 = arith.addf %31, %30 : vector<1x4xf32>
    %33 = arith.divf %31, %32 : vector<1x4xf32>
    %34 = vector.extract_strided_slice %2 {offsets = [14, 0], sizes = [2, 4], strides = [1, 1]} : vector<16x4xf32> to vector<2x4xf32>
    %cst_9 = arith.constant dense<0.000000e+00> : vector<4xf32>
    %35 = vector.multi_reduction <add>, %34, %cst_9 [0] : vector<2x4xf32> to vector<4xf32>
    %36 = vector.shape_cast %35 : vector<4xf32> to vector<1x4xf32>
    %cst_10 = arith.constant 5.000000e-01 : f32
    %37 = vector.broadcast %cst_10 : f32 to vector<1x4xf32>
    %38 = arith.mulf %36, %37 : vector<1x4xf32>
    %39 = arith.mulf %33, %38 : vector<1x4xf32>
    %cst_11 = arith.constant 1.000000e+00 : f32
    %40 = vector.broadcast %cst_11 : f32 to vector<1x4xf32>
    %41 = arith.subf %40, %33 : vector<1x4xf32>
    %42 = arith.mulf %41, %23 : vector<1x4xf32>
    %43 = arith.addf %39, %42 : vector<1x4xf32>
    %cst_12 = arith.constant 1.000000e+00 : f32
    %44 = vector.broadcast %cst_12 : f32 to vector<1x4xf32>
    %45 = arith.mulf %44, %43 : vector<1x4xf32>
    %46 = vector.broadcast %45 : vector<1x4xf32> to vector<8x4xf32>
    %47 = arith.addf %11, %46 : vector<8x4xf32>
    %c0_13 = arith.constant 0 : index
    %c0_14 = arith.constant 0 : index
    %48 = vector.load %arg4[%c0_13, %c0_14] : memref<16x4xf32, #tpu.memory_space<vmem>>, vector<8x4xf32>
    tpu.vector_store %arg4[%c0_13, %c0_14], %47 {strides = array<i32>} : memref<16x4xf32, #tpu.memory_space<vmem>>, vector<8x4xf32>,
    %c8 = arith.constant 8 : index
    %c0_15 = arith.constant 0 : index
    %49 = vector.load %arg4[%c8, %c0_15] : memref<16x4xf32, #tpu.memory_space<vmem>>, vector<8x4xf32>
    tpu.vector_store %arg4[%c8, %c0_15], %11 {strides = array<i32>} : memref<16x4xf32, #tpu.memory_space<vmem>>, vector<8x4xf32>,
    return
  }
  func.func @transform_0(%arg0: i32) -> i32 {
    %c0_i32 = arith.constant 0 : i32
    %c0_i32_0 = arith.constant 0 : i32
    return %c0_i32 : i32
  }
  func.func @transform_1(%arg0: i32) -> (i32, i32) {
    %c0_i32 = arith.constant 0 : i32
    %c0_i32_0 = arith.constant 0 : i32
    %c0_i32_1 = arith.constant 0 : i32
    return %c0_i32, %c0_i32_0 : i32, i32
  }
  func.func @transform_2(%arg0: i32) -> (i32, i32) {
    %c0_i32 = arith.constant 0 : i32
    %c0_i32_0 = arith.constant 0 : i32
    return %c0_i32, %arg0 : i32, i32
  }
  func.func @transform_3(%arg0: i32) -> (i32, i32) {
    %c0_i32 = arith.constant 0 : i32
    %c0_i32_0 = arith.constant 0 : i32
    return %c0_i32, %arg0 : i32, i32
  }
}

</mosaic_0001>

<llo_original>
// kernel: tpu_custom_call.1
$region0: #{tpu_custom_call.1}
  #allocation0 [shape = 'u32[]', space=smem, size = 0x4, offset = 0x4, fixed_abs, tag = 'smem constant byte address 0x4 - core index']
  #allocation1 [shape = 'u32[72,128]{1,0:T(1,128)}', space=vmem, size = 0x9000, scoped, tag = 'internal scratch']
  %s0 = inlined_call_operand.vmem [shape: f32[2], index: 0, kind: input, shape index: {}]
  %s1 = inlined_call_operand.vmem [shape: f32[16,1], index: 1, kind: input, shape index: {}]
  %s2 = inlined_call_operand.vmem [shape: f32[16,4], index: 2, kind: input, shape index: {}]
  %s3 = inlined_call_operand.vmem [shape: f32[16,4], index: 3, kind: output, shape index: {}]
  %s4 = sld [smem:[#allocation0]]
  $region26: #{tpu_custom_call.1} parent=0
    _
  %s6 = ssub.s32 1, %s4
  %s7 = scalar_select 0, %s6, %s4
  $region1: #{tpu_custom_call.1} parent=0
    #allocation2 [shape = 'u8[512]{0}', space=smem, size = 0x200, scoped, tag = 'input window, operand 0, single buffered']
    #allocation3 [shape = 's32[1]{0}', space=sflag, size = 0x4, scoped, tag = 'scoped memory for tpu_custom_call.1']
    %8 = vsyncpa [#allocation3], 0
    // Predicated region
    $region2: #{tpu_custom_call.1} parent=1 // pred_check
      _
    $region3: #{tpu_custom_call.1} parent=1 // pred_check_branch
      %10 = sbr.rel (0) target = $region5
    $region4: #{tpu_custom_call.1} parent=1 // pred_region
      %12 = vsyncadd [#allocation3], 0
      %s14 = sshll.u32 %s0, 4
      %s15 = int_to_ptr.vmem [resolvable:$true] %s14
      %17 = dma.vmem_to_smem %s15, 16, [#allocation2], [#allocation3]
    $region5: #{tpu_custom_call.1} parent=1 // pred_fallthru
      _
    // Predicated region
    $region6: #{tpu_custom_call.1} parent=1 // pred_check
      _
    $region7: #{tpu_custom_call.1} parent=1 // pred_check_branch
      %19 = sbr.rel (0) target = $region9
    $region8: #{tpu_custom_call.1} parent=1 // pred_region
      _
    $region9: #{tpu_custom_call.1} parent=1 // pred_fallthru
      _
    // Predicated region
    $region10: #{tpu_custom_call.1} parent=1 // pred_check
      _
    $region11: #{tpu_custom_call.1} parent=1 // pred_check_branch
      %21 = sbr.rel (0) target = $region13
    $region12: #{tpu_custom_call.1} parent=1 // pred_region
      _
    $region13: #{tpu_custom_call.1} parent=1 // pred_fallthru
      _
    // Predicated region
    $region14: #{tpu_custom_call.1} parent=1 // pred_check
      _
    $region15: #{tpu_custom_call.1} parent=1 // pred_check_branch
      %23 = sbr.rel (0) target = $region17
    $region16: #{tpu_custom_call.1} parent=1 // pred_region
      %25 = dma.done [#allocation3], 16
    $region17: #{tpu_custom_call.1} parent=1 // pred_fallthru
      _
    %26 = sfence
    %s27 = sld [smem:[#allocation2]]
    %s28 = sld [smem:[#allocation2 + $0x1]]
    %v29 = vld [vmem:[%s2] sm:$0xff]
    %v30 = vld [vmem:[%s2 + $0x8] sm:$0xff]
    %v31 = vld [vmem:[%s1] sm:$0xff]
    %v32 = vld [vmem:[%s1 + $0x8] sm:$0xff]
    %34 = vset.pattern.permute.xlu0 0
    %35 = vperm.xlu0 %34, %v31
    %v36 = vpop.permute.xlu0 %35
    %39 = vset.pattern.permute.xlu0 0
    %40 = vperm.xlu0 %39, %v32
    %v41 = vpop.permute.xlu0 %40
    %v43 = vmul.f32 %v36, %v29
    %v44 = vmul.f32 %v41, %v30
    %v45 = vxor.u32 %v43, 2147483648
    %v46 = vmul.f32 %v45, 1.442695
    %v47 = vpow.pop %v46
    %v48 = vadd.f32 %v47, 1.0
    %v49 = vrcp.pop %v48
    %v50 = vmul.f32 %v48, %v49
    %v51 = vsub.f32 1.0, %v50
    %v52 = vmul.f32 %v49, %v51
    %v53 = vadd.f32 %v49, %v52
    %vm54 = vweird.f32 %v48
    %vm55 = vweird.f32 %v49
    %vm56 = vmor %vm54, %vm55
    %v57 = vsel %vm56, %v49, %v53
    %v58 = vand.u32 2147483647, %v48
    %vm59 = vcmp.eq.f32.partialorder %v58, 8.507059e+37
    %v60 = vand.u32 %v48, 2147483648
    %v61 = vor.u32 1.1754944e-38, %v60
    %v62 = vsel %vm59, %v61, %v57
    %v63 = vmul.f32 1.0, %v62
    %vm64 = vcmask 29696
    %v65 = vsel %vm64, %v44, 0.0
    %v66 = vrot.slane %v65, 4
    %v67 = vadd.f32 %v65, %v66
    %v68 = vrot.slane %v67, 2
    %v69 = vadd.f32 %v67, %v68
    %v70 = vrot.slane %v69, 1
    %v71 = vadd.f32 %v69, %v70
    %v72 = vstv %s27
    %v73 = vadd.f32 %v71, %v72
    %vm74 = vcmp.gt.f32.partialorder %v73, 20.0
    %v75 = vmin.f32 %v73, 20.0
    %v76 = vmul.f32 %v75, 1.442695
    %v77 = vpow.pop %v76
    %v78 = vadd.f32 %v77, 1.0
    %v79 = vlog2.pop %v78
    %v80 = vmul.f32 %v79, 0.6931472
    %v81 = vmul.f32 -0.5, %v77
    %v82 = vadd.f32 %v81, 1.0
    %v83 = vmul.f32 %v82, %v77
    %v84 = vand.u32 2147483647, %v77
    %vm85 = vcmp.lt.f32.partialorder %v84, 0.0004427343
    %v86 = vsel %vm85, %v83, %v80
    %v87 = vsel %vm74, %v73, %v86
    %v89 = vrot.slane %v44, 6
    %vm91 = vcmask 25600
    %v92 = vsel %vm91, %v89, 0.0
    %v93 = vrot.slane %v92, 4
    %v94 = vadd.f32 %v92, %v93
    %v95 = vrot.slane %v94, 2
    %v96 = vadd.f32 %v94, %v95
    %v97 = vrot.slane %v96, 1
    %v98 = vadd.f32 %v96, %v97
    %v99 = vstv %s28
    %v100 = vadd.f32 %v98, %v99
    %v101 = vxor.u32 %v100, 2147483648
    %v102 = vmul.f32 %v101, 1.442695
    %v103 = vpow.pop %v102
    %v104 = vadd.f32 %v103, 1.0
    %v105 = vrcp.pop %v104
    %v106 = vmul.f32 %v104, %v105
    %v107 = vsub.f32 1.0, %v106
    %v108 = vmul.f32 %v105, %v107
    %v109 = vadd.f32 %v105, %v108
    %vm110 = vweird.f32 %v104
    %vm111 = vweird.f32 %v105
    %vm112 = vmor %vm110, %vm111
    %v113 = vsel %vm112, %v105, %v109
    %v114 = vand.u32 2147483647, %v104
    %vm115 = vcmp.eq.f32.partialorder %v114, 8.507059e+37
    %v116 = vand.u32 %v104, 2147483648
    %v117 = vor.u32 1.1754944e-38, %v116
    %v118 = vsel %vm115, %v117, %v113
    %v119 = vmul.f32 1.0, %v118
    %v121 = vrot.slane %v30, 6
    %v123 = vsel %vm91, %v121, 0.0
    %v124 = vrot.slane %v123, 4
    %v125 = vadd.f32 %v123, %v124
    %v126 = vrot.slane %v125, 2
    %v127 = vadd.f32 %v125, %v126
    %v128 = vrot.slane %v127, 1
    %v129 = vadd.f32 %v127, %v128
    %v130 = vmul.f32 %v129, 0.5
    %v131 = vmul.f32 %v119, %v130
    %v132 = vsub.f32 1.0, %v119
    %v133 = vmul.f32 %v132, %v87
    %v134 = vadd.f32 %v131, %v133
    %v135 = vadd.f32 %v63, %v134
    %vm136 = vcmask 31744
    %137 = vst.msk [vmem:[%s3] sm:$0xff] %vm136, %v135
    %138 = vst.msk [vmem:[%s3 + $0x8] sm:$0xff] %vm136, %v63
    // Predicated region
    $region18: #{tpu_custom_call.1} parent=1 // pred_check
      _
    $region19: #{tpu_custom_call.1} parent=1 // pred_check_branch
      %140 = sbr.rel (0) target = $region21
    $region20: #{tpu_custom_call.1} parent=1 // pred_region
      _
    $region21: #{tpu_custom_call.1} parent=1 // pred_fallthru
      _
    // Predicated region
    $region22: #{tpu_custom_call.1} parent=1 // pred_check
      _
    $region23: #{tpu_custom_call.1} parent=1 // pred_check_branch
      %142 = sbr.rel (0) target = $region25
    $region24: #{tpu_custom_call.1} parent=1 // pred_region
      _
    $region25: #{tpu_custom_call.1} parent=1 // pred_fallthru
      _
    %143 = vsyncpa [#allocation3], 1

</llo_original>
